<compile_context>
chip_gen: v7x
topology: tpu7x:2x2x1
jax: 0.10.0
libtpu: 0.0.40
codegen_flags: <defaults>
</compile_context>

<pallas_src>
import functools

import jax
import jax.numpy as jnp
import numpy as np
from jax.experimental import pallas as pl
from jax.experimental.pallas import tpu as pltpu


# ----------------------------------------------------------------------------
# Pallas kernel 1: Conv1d (same padding) + folded BatchNorm + ReLU, per batch row.
# x: (T, Cin) f32, w: (K*Cin, Cout) [compute dtype], scale/shift: (1, Cout) f32 -> out (T, Cout).
# Padding is materialized in-register (no HBM pad pass); the K taps become one im2col matmul.
# ----------------------------------------------------------------------------
def _conv_bn_relu_kernel(x_ref, w_ref, scale_ref, shift_ref, o_ref):
    T, Cin = x_ref.shape
    KC, _ = w_ref.shape
    K = KC // Cin
    pad = K // 2

    x = x_ref[...]                                        # (T, Cin) f32
    if pad > 0:
        z = jnp.zeros((pad, Cin), x.dtype)
        xp = jnp.concatenate([z, x, z], axis=0)           # (T + 2*pad, Cin)
    else:
        xp = x
    if K > 1:
        col = jnp.concatenate([xp[k:k + T, :] for k in range(K)], axis=1)   # (T, K*Cin)
    else:
        col = xp

    y = jnp.dot(col.astype(w_ref.dtype), w_ref[...],
                preferred_element_type=jnp.float32)       # one MXU matmul
    y = y * scale_ref[...] + shift_ref[...]               # folded conv-bias + eval-mode BN (f32)
    o_ref[...] = jnp.maximum(y, 0.0)


def conv_bn_relu(x, w_flat, scale, shift):
    """x: (B, T, Cin) f32 ; w_flat: (K*Cin, Cout) ; scale/shift: (1, Cout) -> (B, T, Cout) f32."""
    B, T, Cin = x.shape
    KC, Cout = w_flat.shape
    return pl.pallas_call(
        _conv_bn_relu_kernel,
        out_shape=jax.ShapeDtypeStruct((B, T, Cout), jnp.float32),
        grid=(B,),
        in_specs=[
            pl.BlockSpec((None, T, Cin), lambda b: (b, 0, 0)),
            pl.BlockSpec((KC, Cout), lambda b: (0, 0)),       # grid-invariant weight
            pl.BlockSpec((1, Cout), lambda b: (0, 0)),
            pl.BlockSpec((1, Cout), lambda b: (0, 0)),
        ],
        out_specs=pl.BlockSpec((None, T, Cout), lambda b: (b, 0, 0)),
        compiler_params=pltpu.CompilerParams(dimension_semantics=("parallel",)),
    )(x, w_flat, scale, shift)


# ----------------------------------------------------------------------------
# Pallas kernel 2: single-layer bidirectional LSTM, batched recurrence.
# The batch tile is laid out time-major-flat: x (T*Bt, C); rows [t*Bt, (t+1)*Bt) hold timestep t.
# Gate order matches PyTorch: [i, f, g, o].
# ----------------------------------------------------------------------------
def _bilstm_kernel(x_ref, wih_f_ref, whh_f_ref, b_f_ref,
                   wih_b_ref, whh_b_ref, b_b_ref,
                   o_ref, xgf_ref, xgb_ref, *, block_b):
    Bt = block_b
    T = x_ref.shape[0] // Bt
    H = whh_f_ref.shape[0]
    cdt = wih_f_ref.dtype

    # Input projections for all timesteps & whole batch tile (M = T*Bt -> full MXU rows),
    # staged in f32 VMEM scratch.
    x = x_ref[...].astype(cdt)                             # (T*Bt, C)
    xgf_ref[...] = jnp.dot(x, wih_f_ref[...],
                           preferred_element_type=jnp.float32) + b_f_ref[...]
    xgb_ref[...] = jnp.dot(x, wih_b_ref[...],
                           preferred_element_type=jnp.float32) + b_b_ref[...]

    def cell(pre, h, c, whh_ref):
        g = pre + jnp.dot(h.astype(cdt), whh_ref[...],
                          preferred_element_type=jnp.float32)   # (Bt, 4H) f32
        i = jax.nn.sigmoid(g[:, 0:H])
        f = jax.nn.sigmoid(g[:, H:2 * H])
        gg = jnp.tanh(g[:, 2 * H:3 * H])
        o = jax.nn.sigmoid(g[:, 3 * H:4 * H])
        c2 = f * c + i * gg
        h2 = o * jnp.tanh(c2)
        return h2, c2

    # Fused forward/backward time loop: two independent recurrence chains per iteration
    # interleave in the VLIW schedule; hidden states are stored straight into the output.
    def body(t, carry):
        hf, cf, hb, cb = carry
        s = T - 1 - t
        rf = pl.multiple_of(t * Bt, Bt)
        rb = pl.multiple_of(s * Bt, Bt)
        hf, cf = cell(xgf_ref[pl.ds(rf, Bt), :], hf, cf, whh_f_ref)
        hb, cb = cell(xgb_ref[pl.ds(rb, Bt), :], hb, cb, whh_b_ref)
        o_ref[pl.ds(rf, Bt), 0:H] = hf
        o_ref[pl.ds(rb, Bt), H:2 * H] = hb
        return hf, cf, hb, cb

    z = jnp.zeros((Bt, H), jnp.float32)
    jax.lax.fori_loop(0, T, body, (z, z, z, z))


def bilstm(x, wih_f, whh_f, b_f, wih_b, whh_b, b_b, *, block_b=8):
    """x: (B, T, C) f32 ; wih_*: (C, 4H) ; whh_*: (H, 4H) ; b_*: (1, 4H) f32 -> (B, T, 2H) f32."""
    B, T, C = x.shape
    H = whh_f.shape[0]
    bb = max(1, min(block_b, B))
    nb = -(-B // bb)
    Bp = nb * bb
    if Bp != B:  # pad batch to a whole number of tiles (padded rows are dropped afterwards)
        x = jnp.pad(x, ((0, Bp - B), (0, 0), (0, 0)))
    # Tile-major + time-major flat layout: (nb, T*bb, C), rows [t*bb, (t+1)*bb) = timestep t.
    x_tm = x.reshape(nb, bb, T, C).transpose(0, 2, 1, 3).reshape(nb, T * bb, C)

    out = pl.pallas_call(
        functools.partial(_bilstm_kernel, block_b=bb),
        out_shape=jax.ShapeDtypeStruct((nb, T * bb, 2 * H), jnp.float32),
        grid=(nb,),
        in_specs=[
            pl.BlockSpec((None, T * bb, C), lambda i: (i, 0, 0)),
            pl.BlockSpec((C, 4 * H), lambda i: (0, 0)),     # grid-invariant weights
            pl.BlockSpec((H, 4 * H), lambda i: (0, 0)),
            pl.BlockSpec((1, 4 * H), lambda i: (0, 0)),
            pl.BlockSpec((C, 4 * H), lambda i: (0, 0)),
            pl.BlockSpec((H, 4 * H), lambda i: (0, 0)),
            pl.BlockSpec((1, 4 * H), lambda i: (0, 0)),
        ],
        out_specs=pl.BlockSpec((None, T * bb, 2 * H), lambda i: (i, 0, 0)),
        scratch_shapes=[
            pltpu.VMEM((T * bb, 4 * H), jnp.float32),        # xg forward
            pltpu.VMEM((T * bb, 4 * H), jnp.float32),        # xg backward
        ],
        compiler_params=pltpu.CompilerParams(dimension_semantics=("parallel",)),
    )(x_tm, wih_f, whh_f, b_f, wih_b, whh_b, b_b)

    y = out.reshape(nb, T, bb, 2 * H).transpose(0, 2, 1, 3).reshape(Bp, T, 2 * H)
    return y[:B]


# ----------------------------------------------------------------------------
# Encoder wrapper (parameter setup + glue in plain JAX, hot paths in Pallas).
# ----------------------------------------------------------------------------
def init_encoder_params(key, voc_size, embedding_dim, encoder_layers, kernel_size, encoder_dim):
    keys = jax.random.split(key, 3 + 4 * encoder_layers + 8)
    kit = iter(keys)
    p = {}
    emb = 0.1 * jax.random.normal(next(kit), (voc_size, embedding_dim), jnp.float32)
    p["embedding"] = emb.at[0].set(0.0)  # padding_idx=0

    p["conv"] = []
    eps = 1e-5
    for idx in range(encoder_layers):
        cin = embedding_dim if idx == 0 else encoder_dim
        w = 0.1 * jax.random.normal(next(kit), (encoder_dim, cin, kernel_size), jnp.float32)
        b = 0.1 * jax.random.normal(next(kit), (encoder_dim,), jnp.float32)
        gamma = 1.0 + 0.05 * jax.random.normal(next(kit), (encoder_dim,), jnp.float32)
        beta = 0.05 * jax.random.normal(next(kit), (encoder_dim,), jnp.float32)
        run_mean = jnp.zeros((encoder_dim,), jnp.float32)
        run_var = jnp.ones((encoder_dim,), jnp.float32)
        # Fold conv bias + eval-mode BN into per-channel scale/shift.
        scale = gamma / jnp.sqrt(run_var + eps)
        shift = beta + (b - run_mean) * scale
        w_kio = jnp.transpose(w, (2, 1, 0))                        # (K, Cin, Cout)
        p["conv"].append({
            "w_flat": w_kio.reshape(kernel_size * cin, encoder_dim),  # im2col weight (K*Cin, Cout)
            "w_oik": w, "b": b, "gamma": gamma, "beta": beta,
            "scale": scale.reshape(1, -1), "shift": shift.reshape(1, -1),
        })

    H = encoder_dim // 2
    lstm = {}
    for d in ("f", "b"):
        lstm["wih_" + d] = 0.1 * jax.random.normal(next(kit), (4 * H, encoder_dim), jnp.float32)
        lstm["whh_" + d] = 0.1 * jax.random.normal(next(kit), (4 * H, H), jnp.float32)
        lstm["bih_" + d] = 0.1 * jax.random.normal(next(kit), (4 * H,), jnp.float32)
        lstm["bhh_" + d] = 0.1 * jax.random.normal(next(kit), (4 * H,), jnp.float32)
    p["lstm"] = lstm
    return p


def encoder_forward(params, tokens, compute_dtype=jnp.bfloat16, lstm_block_b=8):
    """compute_dtype: dtype of MXU operands (bf16 for throughput, f32 for exactness)."""
    cdt = compute_dtype
    # Embedding lookup (glue): (B, T) -> (B, T, E)
    x = jnp.take(params["embedding"], tokens, axis=0)
    # Conv stack (Pallas): channels-last, in-kernel padding, one im2col matmul per block.
    for layer in params["conv"]:
        x = conv_bn_relu(x, layer["w_flat"].astype(cdt), layer["scale"], layer["shift"])
    # BiLSTM (Pallas): batched, fused fwd/bwd recurrence.
    l = params["lstm"]
    y = bilstm(
        x,
        l["wih_f"].T.astype(cdt), l["whh_f"].T.astype(cdt),
        (l["bih_f"] + l["bhh_f"]).reshape(1, -1),
        l["wih_b"].T.astype(cdt), l["whh_b"].T.astype(cdt),
        (l["bih_b"] + l["bhh_b"]).reshape(1, -1),
        block_b=lstm_block_b,
    )
    # Back to PyTorch output layout (B, C, T)
    return jnp.transpose(y, (0, 2, 1))


# ----------------------------------------------------------------------------
# Pure-JAX reference (for correctness check only).
# ----------------------------------------------------------------------------
def _lstm_dir_ref(x, wih, whh, b, reverse):
    H = whh.shape[1]
    xs = x[::-1] if reverse else x

    def step(carry, xt):
        h, c = carry
        g = xt @ wih.T + h @ whh.T + b
        i = jax.nn.sigmoid(g[0:H]); f = jax.nn.sigmoid(g[H:2 * H])
        gg = jnp.tanh(g[2 * H:3 * H]); o = jax.nn.sigmoid(g[3 * H:4 * H])
        c = f * c + i * gg
        h = o * jnp.tanh(c)
        return (h, c), h

    _, hs = jax.lax.scan(step, (jnp.zeros(H), jnp.zeros(H)), xs)
    return hs[::-1] if reverse else hs


def encoder_reference(params, tokens, kernel_size):
    x = jnp.take(params["embedding"], tokens, axis=0)        # (B, T, E)
    x = jnp.transpose(x, (0, 2, 1))                          # (B, E, T)
    pad = kernel_size // 2
    for layer in params["conv"]:
        y = jax.lax.conv_general_dilated(
            x, layer["w_oik"], window_strides=(1,), padding=[(pad, pad)],
            dimension_numbers=("NCH", "OIH", "NCH"))
        y = y * layer["scale"].reshape(1, -1, 1) + layer["shift"].reshape(1, -1, 1)
        x = jnp.maximum(y, 0.0)
    x = jnp.transpose(x, (0, 2, 1))                          # (B, T, C)
    l = params["lstm"]
    outs = []
    for b_idx in range(x.shape[0]):
        hf = _lstm_dir_ref(x[b_idx], l["wih_f"], l["whh_f"], l["bih_f"] + l["bhh_f"], False)
        hb = _lstm_dir_ref(x[b_idx], l["wih_b"], l["whh_b"], l["bih_b"] + l["bhh_b"], True)
        outs.append(jnp.concatenate([hf, hb], axis=-1))
    y = jnp.stack(outs, axis=0)
    return jnp.transpose(y, (0, 2, 1))


if __name__ == "__main__":
    # Small, forward-consistent shapes.  (Production Tacotron2 sizes: ENC=512, H=256 are
    # lane-aligned; this toy config intentionally exercises the masked/lane-sparse paths.)
    VOC, EMB, LAYERS, K, ENC = 20, 32, 2, 3, 32
    B, T = 2, 8

    key = jax.random.PRNGKey(0)
    pkey, tkey = jax.random.split(key)
    params = init_encoder_params(pkey, VOC, EMB, LAYERS, K, ENC)

    tokens = jax.random.randint(tkey, (B, T), 0, VOC, dtype=jnp.int32)
    tokens = tokens.at[0, -2:].set(0)  # exercise padding_idx=0 rows

    ref = jax.block_until_ready(encoder_reference(params, tokens, K))

    # f32 MXU operands: tight correctness check.
    fwd32 = jax.jit(functools.partial(encoder_forward, compute_dtype=jnp.float32))
    out32 = jax.block_until_ready(fwd32(params, tokens))
    assert out32.shape == (B, ENC, T), out32.shape
    np.testing.assert_allclose(np.asarray(out32), np.asarray(ref), rtol=1e-4, atol=1e-4)

    # bf16 MXU operands (production throughput config): loose check.
    fwd16 = jax.jit(functools.partial(encoder_forward, compute_dtype=jnp.bfloat16))
    out16 = jax.block_until_ready(fwd16(params, tokens))
    assert out16.shape == (B, ENC, T), out16.shape
    np.testing.assert_allclose(np.asarray(out16), np.asarray(ref), rtol=2e-2, atol=2e-2)

    print("KERNEL_OK")
</pallas_src>

<mosaic_0001>
module attributes {stable_mosaic.version = 11 : i64} {
  func.func @_conv_bn_relu_kernel(%arg0: i32, %arg1: memref<1x8x32xf32, #tpu.memory_space<vmem>>, %arg2: memref<96x32xf32, #tpu.memory_space<vmem>>, %arg3: memref<1x32xf32, #tpu.memory_space<vmem>>, %arg4: memref<1x32xf32, #tpu.memory_space<vmem>>, %arg5: memref<1x8x32xf32, #tpu.memory_space<vmem>>) attributes {dimension_semantics = [#tpu.dimension_semantics<parallel>], iteration_bounds = array<i64: 2>, scalar_prefetch = 0 : i64, scratch_operands = 0 : i64, tpu.core_type = #tpu.core_type<tc>, window_params = [{transform_indices = @transform_0, window_bounds = array<i64: 1, 8, 32>}, {pipeline_mode = #tpu.pipeline_mode<synchronous>, transform_indices = @transform_1, window_bounds = array<i64: 96, 32>}, {pipeline_mode = #tpu.pipeline_mode<synchronous>, transform_indices = @transform_2, window_bounds = array<i64: 1, 32>}, {pipeline_mode = #tpu.pipeline_mode<synchronous>, transform_indices = @transform_3, window_bounds = array<i64: 1, 32>}, {transform_indices = @transform_4, window_bounds = array<i64: 1, 8, 32>}]} {
    %c0 = arith.constant 0 : index
    %c0_0 = arith.constant 0 : index
    %c0_1 = arith.constant 0 : index
    %0 = vector.load %arg1[%c0, %c0_0, %c0_1] : memref<1x8x32xf32, #tpu.memory_space<vmem>>, vector<1x8x32xf32>
    %1 = vector.shape_cast %0 : vector<1x8x32xf32> to vector<8x32xf32>
    %cst = arith.constant 0.000000e+00 : f32
    %2 = vector.broadcast %cst : f32 to vector<1x32xf32>
    %3 = tpu.concatenate %2, %1, %2 in 0 : vector<1x32xf32>, vector<8x32xf32>, vector<1x32xf32> -> vector<10x32xf32>
    %4 = vector.extract_strided_slice %3 {offsets = [0, 0], sizes = [8, 32], strides = [1, 1]} : vector<10x32xf32> to vector<8x32xf32>
    %5 = vector.extract_strided_slice %3 {offsets = [1, 0], sizes = [8, 32], strides = [1, 1]} : vector<10x32xf32> to vector<8x32xf32>
    %6 = vector.extract_strided_slice %3 {offsets = [2, 0], sizes = [8, 32], strides = [1, 1]} : vector<10x32xf32> to vector<8x32xf32>
    %7 = tpu.concatenate %4, %5, %6 in 1 : vector<8x32xf32>, vector<8x32xf32>, vector<8x32xf32> -> vector<8x96xf32>
    %c0_2 = arith.constant 0 : index
    %c0_3 = arith.constant 0 : index
    %8 = vector.load %arg2[%c0_2, %c0_3] : memref<96x32xf32, #tpu.memory_space<vmem>>, vector<96x32xf32>
    %cst_4 = arith.constant dense<0.000000e+00> : vector<8x32xf32>
    %9 = tpu.matmul %7, %8, %cst_4 {dimension_numbers = #tpu.dot_dimension_numbers<[1], [0], [0], [1], [0, 0, 1, 1], [], []>} : vector<8x96xf32>, vector<96x32xf32>, vector<8x32xf32> -> vector<8x32xf32>
    %c0_5 = arith.constant 0 : index
    %c0_6 = arith.constant 0 : index
    %10 = vector.load %arg3[%c0_5, %c0_6] : memref<1x32xf32, #tpu.memory_space<vmem>>, vector<1x32xf32>
    %11 = vector.broadcast %10 : vector<1x32xf32> to vector<8x32xf32>
    %12 = arith.mulf %9, %11 : vector<8x32xf32>
    %c0_7 = arith.constant 0 : index
    %c0_8 = arith.constant 0 : index
    %13 = vector.load %arg4[%c0_7, %c0_8] : memref<1x32xf32, #tpu.memory_space<vmem>>, vector<1x32xf32>
    %14 = vector.broadcast %13 : vector<1x32xf32> to vector<8x32xf32>
    %15 = arith.addf %12, %14 : vector<8x32xf32>
    %cst_9 = arith.constant 0.000000e+00 : f32
    %16 = vector.broadcast %cst_9 : f32 to vector<8x32xf32>
    %17 = arith.maximumf %15, %16 : vector<8x32xf32>
    %c0_10 = arith.constant 0 : index
    %c0_11 = arith.constant 0 : index
    %c0_12 = arith.constant 0 : index
    %18 = vector.load %arg5[%c0_10, %c0_11, %c0_12] : memref<1x8x32xf32, #tpu.memory_space<vmem>>, vector<1x8x32xf32>
    %19 = vector.shape_cast %18 : vector<1x8x32xf32> to vector<8x32xf32>
    %20 = vector.shape_cast %17 : vector<8x32xf32> to vector<1x8x32xf32>
    tpu.vector_store %arg5[%c0_10, %c0_11, %c0_12], %20 {strides = array<i32>} : memref<1x8x32xf32, #tpu.memory_space<vmem>>, vector<1x8x32xf32>,
    return
  }
  func.func @transform_0(%arg0: i32) -> (i32, i32, i32) {
    %c0_i32 = arith.constant 0 : i32
    %c0_i32_0 = arith.constant 0 : i32
    %c0_i32_1 = arith.constant 0 : i32
    return %arg0, %c0_i32, %c0_i32_0 : i32, i32, i32
  }
  func.func @transform_1(%arg0: i32) -> (i32, i32) {
    %c0_i32 = arith.constant 0 : i32
    %c0_i32_0 = arith.constant 0 : i32
    %c0_i32_1 = arith.constant 0 : i32
    return %c0_i32, %c0_i32_0 : i32, i32
  }
  func.func @transform_2(%arg0: i32) -> (i32, i32) {
    %c0_i32 = arith.constant 0 : i32
    %c0_i32_0 = arith.constant 0 : i32
    %c0_i32_1 = arith.constant 0 : i32
    return %c0_i32, %c0_i32_0 : i32, i32
  }
  func.func @transform_3(%arg0: i32) -> (i32, i32) {
    %c0_i32 = arith.constant 0 : i32
    %c0_i32_0 = arith.constant 0 : i32
    %c0_i32_1 = arith.constant 0 : i32
    return %c0_i32, %c0_i32_0 : i32, i32
  }
  func.func @transform_4(%arg0: i32) -> (i32, i32, i32) {
    %c0_i32 = arith.constant 0 : i32
    %c0_i32_0 = arith.constant 0 : i32
    %c0_i32_1 = arith.constant 0 : i32
    return %arg0, %c0_i32, %c0_i32_0 : i32, i32, i32
  }
}

module attributes {stable_mosaic.version = 11 : i64} {
  func.func @_bilstm_kernel(%arg0: i32, %arg1: memref<1x16x32xf32, #tpu.memory_space<vmem>>, %arg2: memref<32x64xf32, #tpu.memory_space<vmem>>, %arg3: memref<16x64xf32, #tpu.memory_space<vmem>>, %arg4: memref<1x64xf32, #tpu.memory_space<vmem>>, %arg5: memref<32x64xf32, #tpu.memory_space<vmem>>, %arg6: memref<16x64xf32, #tpu.memory_space<vmem>>, %arg7: memref<1x64xf32, #tpu.memory_space<vmem>>, %arg8: memref<1x16x32xf32, #tpu.memory_space<vmem>>, %arg9: memref<16x64xf32, #tpu.memory_space<vmem>>, %arg10: memref<16x64xf32, #tpu.memory_space<vmem>>) attributes {dimension_semantics = [#tpu.dimension_semantics<parallel>], iteration_bounds = array<i64: 1>, scalar_prefetch = 0 : i64, scratch_operands = 2 : i64, tpu.core_type = #tpu.core_type<tc>, window_params = [{transform_indices = @transform_0, window_bounds = array<i64: 1, 16, 32>}, {pipeline_mode = #tpu.pipeline_mode<synchronous>, transform_indices = @transform_1, window_bounds = array<i64: 32, 64>}, {pipeline_mode = #tpu.pipeline_mode<synchronous>, transform_indices = @transform_2, window_bounds = array<i64: 16, 64>}, {pipeline_mode = #tpu.pipeline_mode<synchronous>, transform_indices = @transform_3, window_bounds = array<i64: 1, 64>}, {pipeline_mode = #tpu.pipeline_mode<synchronous>, transform_indices = @transform_4, window_bounds = array<i64: 32, 64>}, {pipeline_mode = #tpu.pipeline_mode<synchronous>, transform_indices = @transform_5, window_bounds = array<i64: 16, 64>}, {pipeline_mode = #tpu.pipeline_mode<synchronous>, transform_indices = @transform_6, window_bounds = array<i64: 1, 64>}, {transform_indices = @transform_7, window_bounds = array<i64: 1, 16, 32>}]} {
    %c0 = arith.constant 0 : index
    %c0_0 = arith.constant 0 : index
    %c0_1 = arith.constant 0 : index
    %0 = vector.load %arg1[%c0, %c0_0, %c0_1] : memref<1x16x32xf32, #tpu.memory_space<vmem>>, vector<1x16x32xf32>
    %1 = vector.shape_cast %0 : vector<1x16x32xf32> to vector<16x32xf32>
    %c0_2 = arith.constant 0 : index
    %c0_3 = arith.constant 0 : index
    %2 = vector.load %arg2[%c0_2, %c0_3] : memref<32x64xf32, #tpu.memory_space<vmem>>, vector<32x64xf32>
    %cst = arith.constant dense<0.000000e+00> : vector<16x64xf32>
    %3 = tpu.matmul %1, %2, %cst {dimension_numbers = #tpu.dot_dimension_numbers<[1], [0], [0], [1], [0, 0, 1, 1], [], []>} : vector<16x32xf32>, vector<32x64xf32>, vector<16x64xf32> -> vector<16x64xf32>
    %c0_4 = arith.constant 0 : index
    %c0_5 = arith.constant 0 : index
    %4 = vector.load %arg4[%c0_4, %c0_5] : memref<1x64xf32, #tpu.memory_space<vmem>>, vector<1x64xf32>
    %5 = vector.broadcast %4 : vector<1x64xf32> to vector<16x64xf32>
    %6 = arith.addf %3, %5 : vector<16x64xf32>
    %c0_6 = arith.constant 0 : index
    %c0_7 = arith.constant 0 : index
    %7 = vector.load %arg9[%c0_6, %c0_7] : memref<16x64xf32, #tpu.memory_space<vmem>>, vector<16x64xf32>
    tpu.vector_store %arg9[%c0_6, %c0_7], %6 {strides = array<i32>} : memref<16x64xf32, #tpu.memory_space<vmem>>, vector<16x64xf32>,
    %c0_8 = arith.constant 0 : index
    %c0_9 = arith.constant 0 : index
    %8 = vector.load %arg5[%c0_8, %c0_9] : memref<32x64xf32, #tpu.memory_space<vmem>>, vector<32x64xf32>
    %cst_10 = arith.constant dense<0.000000e+00> : vector<16x64xf32>
    %9 = tpu.matmul %1, %8, %cst_10 {dimension_numbers = #tpu.dot_dimension_numbers<[1], [0], [0], [1], [0, 0, 1, 1], [], []>} : vector<16x32xf32>, vector<32x64xf32>, vector<16x64xf32> -> vector<16x64xf32>
    %c0_11 = arith.constant 0 : index
    %c0_12 = arith.constant 0 : index
    %10 = vector.load %arg7[%c0_11, %c0_12] : memref<1x64xf32, #tpu.memory_space<vmem>>, vector<1x64xf32>
    %11 = vector.broadcast %10 : vector<1x64xf32> to vector<16x64xf32>
    %12 = arith.addf %9, %11 : vector<16x64xf32>
    %c0_13 = arith.constant 0 : index
    %c0_14 = arith.constant 0 : index
    %13 = vector.load %arg10[%c0_13, %c0_14] : memref<16x64xf32, #tpu.memory_space<vmem>>, vector<16x64xf32>
    tpu.vector_store %arg10[%c0_13, %c0_14], %12 {strides = array<i32>} : memref<16x64xf32, #tpu.memory_space<vmem>>, vector<16x64xf32>,
    %cst_15 = arith.constant 0.000000e+00 : f32
    %14 = vector.broadcast %cst_15 : f32 to vector<2x16xf32>
    %c0_i32 = arith.constant 0 : i32
    %c8_i32 = arith.constant 8 : i32
    %15 = arith.addi %c0_i32, %c8_i32 : i32
    %c1_i32 = arith.constant 1 : i32
    %16:4 = scf.for %arg11 = %c0_i32 to %15 step %c1_i32 iter_args(%arg12 = %14, %arg13 = %14, %arg14 = %14, %arg15 = %14) -> (vector<2x16xf32>, vector<2x16xf32>, vector<2x16xf32>, vector<2x16xf32>)  : i32 {
      %c7_i32 = arith.constant 7 : i32
      %17 = arith.subi %c7_i32, %arg11 : i32
      %c2_i32 = arith.constant 2 : i32
      %18 = arith.muli %arg11, %c2_i32 : i32
      %19 = tpu.assume_multiple %18, 2 : i32
      %c2_i32_17 = arith.constant 2 : i32
      %20 = arith.muli %17, %c2_i32_17 : i32
      %21 = tpu.assume_multiple %20, 2 : i32
      %22 = arith.index_cast %19 : i32 to index
      %c0_18 = arith.constant 0 : index
      %23 = vector.load %arg9[%22, %c0_18] : memref<16x64xf32, #tpu.memory_space<vmem>>, vector<2x64xf32>
      %c0_19 = arith.constant 0 : index
      %c0_20 = arith.constant 0 : index
      %24 = vector.load %arg3[%c0_19, %c0_20] : memref<16x64xf32, #tpu.memory_space<vmem>>, vector<16x64xf32>
      %cst_21 = arith.constant dense<0.000000e+00> : vector<2x64xf32>
      %25 = tpu.matmul %arg12, %24, %cst_21 {dimension_numbers = #tpu.dot_dimension_numbers<[1], [0], [0], [1], [0, 0, 1, 1], [], []>} : vector<2x16xf32>, vector<16x64xf32>, vector<2x64xf32> -> vector<2x64xf32>
      %26 = arith.addf %23, %25 : vector<2x64xf32>
      %27 = vector.extract_strided_slice %26 {offsets = [0, 0], sizes = [2, 16], strides = [1, 1]} : vector<2x64xf32> to vector<2x16xf32>
      %28 = arith.negf %27 : vector<2x16xf32>
      %29 = math.exp %28 : vector<2x16xf32>
      %cst_22 = arith.constant 1.000000e+00 : f32
      %30 = vector.broadcast %cst_22 : f32 to vector<2x16xf32>
      %31 = arith.addf %30, %29 : vector<2x16xf32>
      %32 = arith.divf %30, %31 : vector<2x16xf32>
      %33 = vector.extract_strided_slice %26 {offsets = [0, 16], sizes = [2, 16], strides = [1, 1]} : vector<2x64xf32> to vector<2x16xf32>
      %34 = arith.negf %33 : vector<2x16xf32>
      %35 = math.exp %34 : vector<2x16xf32>
      %cst_23 = arith.constant 1.000000e+00 : f32
      %36 = vector.broadcast %cst_23 : f32 to vector<2x16xf32>
      %37 = arith.addf %36, %35 : vector<2x16xf32>
      %38 = arith.divf %36, %37 : vector<2x16xf32>
      %39 = vector.extract_strided_slice %26 {offsets = [0, 32], sizes = [2, 16], strides = [1, 1]} : vector<2x64xf32> to vector<2x16xf32>
      %40 = math.tanh %39 : vector<2x16xf32>
      %41 = vector.extract_strided_slice %26 {offsets = [0, 48], sizes = [2, 16], strides = [1, 1]} : vector<2x64xf32> to vector<2x16xf32>
      %42 = arith.negf %41 : vector<2x16xf32>
      %43 = math.exp %42 : vector<2x16xf32>
      %cst_24 = arith.constant 1.000000e+00 : f32
      %44 = vector.broadcast %cst_24 : f32 to vector<2x16xf32>
      %45 = arith.addf %44, %43 : vector<2x16xf32>
      %46 = arith.divf %44, %45 : vector<2x16xf32>
      %47 = arith.mulf %38, %arg13 : vector<2x16xf32>
      %48 = arith.mulf %32, %40 : vector<2x16xf32>
      %49 = arith.addf %47, %48 : vector<2x16xf32>
      %50 = math.tanh %49 : vector<2x16xf32>
      %51 = arith.mulf %46, %50 : vector<2x16xf32>
      %52 = arith.index_cast %21 : i32 to index
      %c0_25 = arith.constant 0 : index
      %53 = vector.load %arg10[%52, %c0_25] : memref<16x64xf32, #tpu.memory_space<vmem>>, vector<2x64xf32>
      %c0_26 = arith.constant 0 : index
      %c0_27 = arith.constant 0 : index
      %54 = vector.load %arg6[%c0_26, %c0_27] : memref<16x64xf32, #tpu.memory_space<vmem>>, vector<16x64xf32>
      %cst_28 = arith.constant dense<0.000000e+00> : vector<2x64xf32>
      %55 = tpu.matmul %arg14, %54, %cst_28 {dimension_numbers = #tpu.dot_dimension_numbers<[1], [0], [0], [1], [0, 0, 1, 1], [], []>} : vector<2x16xf32>, vector<16x64xf32>, vector<2x64xf32> -> vector<2x64xf32>
      %56 = arith.addf %53, %55 : vector<2x64xf32>
      %57 = vector.extract_strided_slice %56 {offsets = [0, 0], sizes = [2, 16], strides = [1, 1]} : vector<2x64xf32> to vector<2x16xf32>
      %58 = arith.negf %57 : vector<2x16xf32>
      %59 = math.exp %58 : vector<2x16xf32>
      %cst_29 = arith.constant 1.000000e+00 : f32
      %60 = vector.broadcast %cst_29 : f32 to vector<2x16xf32>
      %61 = arith.addf %60, %59 : vector<2x16xf32>
      %62 = arith.divf %60, %61 : vector<2x16xf32>
      %63 = vector.extract_strided_slice %56 {offsets = [0, 16], sizes = [2, 16], strides = [1, 1]} : vector<2x64xf32> to vector<2x16xf32>
      %64 = arith.negf %63 : vector<2x16xf32>
      %65 = math.exp %64 : vector<2x16xf32>
      %cst_30 = arith.constant 1.000000e+00 : f32
      %66 = vector.broadcast %cst_30 : f32 to vector<2x16xf32>
      %67 = arith.addf %66, %65 : vector<2x16xf32>
      %68 = arith.divf %66, %67 : vector<2x16xf32>
      %69 = vector.extract_strided_slice %56 {offsets = [0, 32], sizes = [2, 16], strides = [1, 1]} : vector<2x64xf32> to vector<2x16xf32>
      %70 = math.tanh %69 : vector<2x16xf32>
      %71 = vector.extract_strided_slice %56 {offsets = [0, 48], sizes = [2, 16], strides = [1, 1]} : vector<2x64xf32> to vector<2x16xf32>
      %72 = arith.negf %71 : vector<2x16xf32>
      %73 = math.exp %72 : vector<2x16xf32>
      %cst_31 = arith.constant 1.000000e+00 : f32
      %74 = vector.broadcast %cst_31 : f32 to vector<2x16xf32>
      %75 = arith.addf %74, %73 : vector<2x16xf32>
      %76 = arith.divf %74, %75 : vector<2x16xf32>
      %77 = arith.mulf %68, %arg15 : vector<2x16xf32>
      %78 = arith.mulf %62, %70 : vector<2x16xf32>
      %79 = arith.addf %77, %78 : vector<2x16xf32>
      %80 = math.tanh %79 : vector<2x16xf32>
      %81 = arith.mulf %76, %80 : vector<2x16xf32>
      %c0_32 = arith.constant 0 : index
      %82 = arith.index_cast %19 : i32 to index
      %c0_33 = arith.constant 0 : index
      %83 = vector.load %arg8[%c0_32, %82, %c0_33] : memref<1x16x32xf32, #tpu.memory_space<vmem>>, vector<1x2x16xf32>
      %84 = vector.shape_cast %83 : vector<1x2x16xf32> to vector<2x16xf32>
      %85 = vector.shape_cast %51 : vector<2x16xf32> to vector<1x2x16xf32>
      tpu.vector_store %arg8[%c0_32, %82, %c0_33], %85 {strides = array<i32>} : memref<1x16x32xf32, #tpu.memory_space<vmem>>, vector<1x2x16xf32>,
      %c0_34 = arith.constant 0 : index
      %86 = arith.index_cast %21 : i32 to index
      %c16 = arith.constant 16 : index
      %87 = vector.load %arg8[%c0_34, %86, %c16] : memref<1x16x32xf32, #tpu.memory_space<vmem>>, vector<1x2x16xf32>
      %88 = vector.shape_cast %87 : vector<1x2x16xf32> to vector<2x16xf32>
      %89 = vector.shape_cast %81 : vector<2x16xf32> to vector<1x2x16xf32>
      tpu.vector_store %arg8[%c0_34, %86, %c16], %89 {strides = array<i32>} : memref<1x16x32xf32, #tpu.memory_space<vmem>>, vector<1x2x16xf32>,
      scf.yield %51, %49, %81, %79 : vector<2x16xf32>, vector<2x16xf32>, vector<2x16xf32>, vector<2x16xf32>
    }
    %c8_i32_16 = arith.constant 8 : i32
    return
  }
  func.func @transform_0(%arg0: i32) -> (i32, i32, i32) {
    %c0_i32 = arith.constant 0 : i32
    %c0_i32_0 = arith.constant 0 : i32
    %c0_i32_1 = arith.constant 0 : i32
    return %arg0, %c0_i32, %c0_i32_0 : i32, i32, i32
  }
  func.func @transform_1(%arg0: i32) -> (i32, i32) {
    %c0_i32 = arith.constant 0 : i32
    %c0_i32_0 = arith.constant 0 : i32
    %c0_i32_1 = arith.constant 0 : i32
    return %c0_i32, %c0_i32_0 : i32, i32
  }
  func.func @transform_2(%arg0: i32) -> (i32, i32) {
    %c0_i32 = arith.constant 0 : i32
    %c0_i32_0 = arith.constant 0 : i32
    %c0_i32_1 = arith.constant 0 : i32
    return %c0_i32, %c0_i32_0 : i32, i32
  }
  func.func @transform_3(%arg0: i32) -> (i32, i32) {
    %c0_i32 = arith.constant 0 : i32
    %c0_i32_0 = arith.constant 0 : i32
    %c0_i32_1 = arith.constant 0 : i32
    return %c0_i32, %c0_i32_0 : i32, i32
  }
  func.func @transform_4(%arg0: i32) -> (i32, i32) {
    %c0_i32 = arith.constant 0 : i32
    %c0_i32_0 = arith.constant 0 : i32
    %c0_i32_1 = arith.constant 0 : i32
    return %c0_i32, %c0_i32_0 : i32, i32
  }
  func.func @transform_5(%arg0: i32) -> (i32, i32) {
    %c0_i32 = arith.constant 0 : i32
    %c0_i32_0 = arith.constant 0 : i32
    %c0_i32_1 = arith.constant 0 : i32
    return %c0_i32, %c0_i32_0 : i32, i32
  }
  func.func @transform_6(%arg0: i32) -> (i32, i32) {
    %c0_i32 = arith.constant 0 : i32
    %c0_i32_0 = arith.constant 0 : i32
    %c0_i32_1 = arith.constant 0 : i32
    return %c0_i32, %c0_i32_0 : i32, i32
  }
  func.func @transform_7(%arg0: i32) -> (i32, i32, i32) {
    %c0_i32 = arith.constant 0 : i32
    %c0_i32_0 = arith.constant 0 : i32
    %c0_i32_1 = arith.constant 0 : i32
    return %arg0, %c0_i32, %c0_i32_0 : i32, i32, i32
  }
}

</mosaic_0001>

<llo_original>
// kernel: encoder_forward.3
$region0: #{encoder_forward.3}
  #allocation0 [shape = 'u32[]', space=smem, size = 0x4, offset = 0x4, fixed_abs, tag = 'smem constant byte address 0x4 - core index']
  #allocation1 [shape = 'u32[144,128]{1,0:T(1,128)}', space=vmem, size = 0x12000, scoped, tag = 'internal scratch']
  %s0 = inlined_call_operand.vmem [shape: f32[2,8,32], index: 0, kind: input, shape index: {}]
  %s1 = inlined_call_operand.vmem [shape: f32[96,32], index: 1, kind: input, shape index: {}]
  %s2 = inlined_call_operand.vmem [shape: f32[1,32], index: 2, kind: input, shape index: {}]
  %s3 = inlined_call_operand.vmem [shape: f32[1,32], index: 3, kind: input, shape index: {}]
  %s4 = inlined_call_operand.vmem [shape: f32[2,8,32], index: 4, kind: output, shape index: {}]
  %s5 = sld [smem:[#allocation0]]
  $region49: #{encoder_forward.3} parent=0
    _
  %s7 = ssub.s32 1, %s5
  %s8 = scalar_select 0, %s7, %s5
  loop: start=0, step=1, limit=4
  $region2: #{encoder_forward.3} parent=0 // loop_pre_header
    _
  $region3: #{encoder_forward.3} parent=0 // loop_header
    %s10 = sphi 0, %s14
    %p11 = scmp.ge.s32.totalorder %s10, 4
    %s20 = sphi 0, %s22
    %s23 = sphi 0, %s20
    %s24 = sphi 0, %s23
    %s40 = sphi 0, %s24
    %s44 = sphi 0, %s44
    %s46 = sphi 0, %s44
    %s47 = sphi 0, %s46
    %s61 = sphi 0, %s47
    %s65 = sphi 0, %s65
    %s67 = sphi 0, %s65
    %s68 = sphi 0, %s67
    %s82 = sphi 0, %s68
    %s86 = sphi 0, %s86
    %s88 = sphi 0, %s86
    %s89 = sphi 0, %s88
    %s103 = sphi 0, %s89
    %s109 = sphi 0, %s111
    %s112 = sphi 0, %s109
    %s113 = sphi 0, %s112
    %s129 = sphi 0, %s113
  $region4: #{encoder_forward.3} parent=0 // loop_header_branch
    %13 = sbr.rel (%p11) target = $region8
  $region5: #{encoder_forward.3} parent=0 // loop_body
    %s15 = ssub.s32 %s10, 1
    %s16 = ssub.s32 %s10, 2
    %s17 = sadd.s32 %s10, 1
    %s18 = ssub.s32 %s10, %s17
    %p19 = scmp.eq.s32.totalorder %s18, 0
    %s21 = sadd.s32 %s20, 1
    %s22 = scalar_select %p19, %s20, %s21
    %p25 = pneg %p19
    %p26 = scmp.eq.s32.totalorder %s10, 1
    %p27 = por %p25, %p26
    %p28 = scmp.ne.s32.totalorder %s20, %s23
    %p29 = scmp.eq.s32.totalorder %s10, 0
    %p30 = por %p28, %p29
    %p31 = scmp.ne.s32.totalorder %s20, %s23
    %p32 = scmp.eq.s32.totalorder %s15, 1
    %p33 = por %p31, %p32
    %p34 = scmp.ne.s32.totalorder %s23, %s24
    %p35 = scmp.eq.s32.totalorder %s15, 0
    %p36 = por %p34, %p35
    %p37 = scmp.ne.s32.totalorder %s23, %s24
    %p38 = scmp.eq.s32.totalorder %s16, 1
    %p39 = por %p37, %p38
    %p41 = scmp.ne.s32.totalorder %s24, %s40
    %p42 = scmp.eq.s32.totalorder %s16, 0
    %p43 = por %p41, %p42
    %s45 = sadd.s32 %s44, 1
    %p48 = scmp.eq.s32.totalorder %s10, 1
    %p49 = scmp.ne.s32.totalorder %s44, %s46
    %p50 = scmp.eq.s32.totalorder %s10, 0
    %p51 = por %p49, %p50
    %p52 = scmp.ne.s32.totalorder %s44, %s46
    %p53 = scmp.eq.s32.totalorder %s15, 1
    %p54 = por %p52, %p53
    %p55 = scmp.ne.s32.totalorder %s46, %s47
    %p56 = scmp.eq.s32.totalorder %s15, 0
    %p57 = por %p55, %p56
    %p58 = scmp.ne.s32.totalorder %s46, %s47
    %p59 = scmp.eq.s32.totalorder %s16, 1
    %p60 = por %p58, %p59
    %p62 = scmp.ne.s32.totalorder %s47, %s61
    %p63 = scmp.eq.s32.totalorder %s16, 0
    %p64 = por %p62, %p63
    %s66 = sadd.s32 %s65, 1
    %p69 = scmp.eq.s32.totalorder %s10, 1
    %p70 = scmp.ne.s32.totalorder %s65, %s67
    %p71 = scmp.eq.s32.totalorder %s10, 0
    %p72 = por %p70, %p71
    %p73 = scmp.ne.s32.totalorder %s65, %s67
    %p74 = scmp.eq.s32.totalorder %s15, 1
    %p75 = por %p73, %p74
    %p76 = scmp.ne.s32.totalorder %s67, %s68
    %p77 = scmp.eq.s32.totalorder %s15, 0
    %p78 = por %p76, %p77
    %p79 = scmp.ne.s32.totalorder %s67, %s68
    %p80 = scmp.eq.s32.totalorder %s16, 1
    %p81 = por %p79, %p80
    %p83 = scmp.ne.s32.totalorder %s68, %s82
    %p84 = scmp.eq.s32.totalorder %s16, 0
    %p85 = por %p83, %p84
    %s87 = sadd.s32 %s86, 1
    %p90 = scmp.eq.s32.totalorder %s10, 1
    %p91 = scmp.ne.s32.totalorder %s86, %s88
    %p92 = scmp.eq.s32.totalorder %s10, 0
    %p93 = por %p91, %p92
    %p94 = scmp.ne.s32.totalorder %s86, %s88
    %p95 = scmp.eq.s32.totalorder %s15, 1
    %p96 = por %p94, %p95
    %p97 = scmp.ne.s32.totalorder %s88, %s89
    %p98 = scmp.eq.s32.totalorder %s15, 0
    %p99 = por %p97, %p98
    %p100 = scmp.ne.s32.totalorder %s88, %s89
    %p101 = scmp.eq.s32.totalorder %s16, 1
    %p102 = por %p100, %p101
    %p104 = scmp.ne.s32.totalorder %s89, %s103
    %p105 = scmp.eq.s32.totalorder %s16, 0
    %p106 = por %p104, %p105
    %s107 = ssub.s32 %s10, %s17
    %p108 = scmp.eq.s32.totalorder %s107, 0
    %s110 = sadd.s32 %s109, 1
    %s111 = scalar_select %p108, %s109, %s110
    %p114 = pneg %p108
    %p115 = scmp.eq.s32.totalorder %s10, 1
    %p116 = por %p114, %p115
    %p117 = scmp.ne.s32.totalorder %s109, %s112
    %p118 = scmp.eq.s32.totalorder %s10, 0
    %p119 = por %p117, %p118
    %p120 = scmp.ne.s32.totalorder %s109, %s112
    %p121 = scmp.eq.s32.totalorder %s15, 1
    %p122 = por %p120, %p121
    %p123 = scmp.ne.s32.totalorder %s112, %s113
    %p124 = scmp.eq.s32.totalorder %s15, 0
    %p125 = por %p123, %p124
    %p126 = scmp.ne.s32.totalorder %s112, %s113
    %p127 = scmp.eq.s32.totalorder %s16, 1
    %p128 = por %p126, %p127
    %p130 = scmp.ne.s32.totalorder %s113, %s129
    %p131 = scmp.eq.s32.totalorder %s16, 0
    %p132 = por %p130, %p131
    %p133 = scmp.le.s32.totalorder 1, %s10
    %p134 = scmp.lt.s32.totalorder %s10, 3
    %p135 = pnand %p133, %p134
    %p136 = pneg %p135
    // Predicated region
    $region9: #{encoder_forward.3} parent=5 // pred_check
      _
    $region10: #{encoder_forward.3} parent=5 // pred_check_branch
      %138 = sbr.rel (%p135) target = $region12
    $region11: #{encoder_forward.3} parent=5 // pred_region
      %s139 = ssub.s32 %s10, 1
      // Predicated region
      $region13: #{encoder_forward.3} parent=11 // pred_check
        %p140 = pneg %p57
      $region14: #{encoder_forward.3} parent=11 // pred_check_branch
        %142 = sbr.rel (%p140) target = $region16
      $region15: #{encoder_forward.3} parent=11 // pred_region
        _
      $region16: #{encoder_forward.3} parent=11 // pred_fallthru
        _
      // Predicated region
      $region17: #{encoder_forward.3} parent=11 // pred_check
        %p143 = pneg %p78
      $region18: #{encoder_forward.3} parent=11 // pred_check_branch
        %145 = sbr.rel (%p143) target = $region20
      $region19: #{encoder_forward.3} parent=11 // pred_region
        _
      $region20: #{encoder_forward.3} parent=11 // pred_fallthru
        _
      // Predicated region
      $region21: #{encoder_forward.3} parent=11 // pred_check
        %p146 = pneg %p99
      $region22: #{encoder_forward.3} parent=11 // pred_check_branch
        %148 = sbr.rel (%p146) target = $region24
      $region23: #{encoder_forward.3} parent=11 // pred_region
        _
      $region24: #{encoder_forward.3} parent=11 // pred_fallthru
        _
    $region12: #{encoder_forward.3} parent=5 // pred_fallthru
      _
    %p149 = scmp.lt.s32.totalorder %s10, 2
    // Predicated region
    $region25: #{encoder_forward.3} parent=5 // pred_check
      %p150 = pneg %p149
    $region26: #{encoder_forward.3} parent=5 // pred_check_branch
      %152 = sbr.rel (%p150) target = $region28
    $region27: #{encoder_forward.3} parent=5 // pred_region
      // Predicated region
      $region29: #{encoder_forward.3} parent=27 // pred_check
        %p153 = pneg %p30
      $region30: #{encoder_forward.3} parent=27 // pred_check_branch
        %155 = sbr.rel (%p153) target = $region32
      $region31: #{encoder_forward.3} parent=27 // pred_region
        %p156 = scmp.lt.s32.totalorder %s10, 1
        %s157 = scalar_select %p156, %s10, 1
        %s158 = smul.addr %s157, 8
        %s159 = scalar_lea.vmem %s0, %s158
      $region32: #{encoder_forward.3} parent=27 // pred_fallthru
        _
    $region28: #{encoder_forward.3} parent=5 // pred_fallthru
      _
    %p160 = scmp.le.s32.totalorder 1, %s10
    %p161 = scmp.lt.s32.totalorder %s10, 3
    %p162 = pnand %p160, %p161
    %p163 = pneg %p162
    // Predicated region
    $region33: #{encoder_forward.3} parent=5 // pred_check
      _
    $region34: #{encoder_forward.3} parent=5 // pred_check_branch
      %165 = sbr.rel (%p162) target = $region36
    $region35: #{encoder_forward.3} parent=5 // pred_region
      %s166 = ssub.s32 %s10, 1
      %p167 = scmp.lt.s32.totalorder %s15, 1
      %s168 = scalar_select %p167, %s15, 1
      %s169 = smul.addr %s168, 8
      %s170 = scalar_lea.vmem %s0, %s169
      %p171 = pneg %p36
      %p172 = pneg %p33
      %p173 = pneg %p57
      %p174 = pneg %p54
      %p175 = pneg %p78
      %p176 = pneg %p75
      %p177 = pneg %p99
      %p178 = pneg %p96
      %p179 = pneg %p125
      %p180 = pneg %p122
      %p181 = scmp.lt.s32.totalorder %s15, 1
      %s182 = scalar_select %p181, %s15, 1
      %s183 = smul.addr %s182, 8
      %s184 = scalar_lea.vmem %s4, %s183
      %p185 = scmp.lt.s32.totalorder %s15, 1
      %s186 = scalar_select %p185, %s15, 1
      %s187 = smul.addr %s186, 8
      %s188 = scalar_lea.vmem %s0, %s187
      %p189 = scmp.lt.s32.totalorder %s15, 1
      %s190 = scalar_select %p189, %s15, 1
      %s191 = smul.addr %s190, 8
      %s192 = scalar_lea.vmem %s4, %s191
      %v193 = vld [vmem:[%s188] sm:$0xff]
      %v195 = vrot.slane %v193, 7
      %vm197 = vcmask 1040384
      %v198 = vsel %vm197, 0.0, %v195
      %v199 = vsel %vm197, %v195, 0.0
      %vm202 = vcmask 1046528
      %v203 = vrot.slane %v198, 1
      %v204 = vrot.slane %v199, 1
      %v205 = vsel %vm202, %v203, %v204
      %206 = vrot.lane.b32.xlu0 %v205, 32
      %v207 = vpop.permute.xlu0 %206
      %vm209 = vcmask 1045504
      %v210 = vrot.slane %v198, 2
      %v211 = vrot.slane %v199, 2
      %v212 = vsel %vm209, %v210, %v211
      %213 = vrot.lane.b32.xlu0 %v212, 64
      %v214 = vpop.permute.xlu0 %213
      %vm216 = vcmask 261120
      %v217 = vsel %vm216, %v198, %v207
      %vm218 = vcmask 523264
      %v219 = vsel %vm218, %v217, %v214
      %v220 = vld [vmem:[%s1] sm:$0xff]
      %v221 = vld [vmem:[%s1 + $0x8] sm:$0xff]
      %v222 = vld [vmem:[%s1 + $0x10] sm:$0xff]
      %v223 = vld [vmem:[%s1 + $0x18] sm:$0xff]
      %v224 = vld [vmem:[%s1 + $0x20] sm:$0xff]
      %v225 = vld [vmem:[%s1 + $0x28] sm:$0xff]
      %v226 = vld [vmem:[%s1 + $0x30] sm:$0xff]
      %v227 = vld [vmem:[%s1 + $0x38] sm:$0xff]
      %v228 = vld [vmem:[%s1 + $0x40] sm:$0xff]
      %v229 = vld [vmem:[%s1 + $0x48] sm:$0xff]
      %v230 = vld [vmem:[%s1 + $0x50] sm:$0xff]
      %v231 = vld [vmem:[%s1 + $0x58] sm:$0xff]
      %vm232 = vcmask 785408
      %v234 = vsel %vm232, %v219, 0
      %236 = vmatprep.subr.mxu0 0.0
      %237 = vmatpush1.msra.mxu0 %v220
      %238 = vmatprep.subr.mxu0 0.0
      %239 = vmatpush1.msra.mxu0 %v221
      %240 = vmatprep.subr.mxu0 0.0
      %241 = vmatpush1.msra.mxu0 %v222
      %242 = vmatprep.subr.mxu0 0.0
      %243 = vmatpush1.msra.mxu0 %v223
      %244 = vmatprep.subr.mxu0 0.0
      %245 = vmatpush1.msra.mxu0 %v224
      %246 = vmatprep.subr.mxu0 0.0
      %247 = vmatpush1.msra.mxu0 %v225
      %248 = vmatprep.subr.mxu0 0.0
      %249 = vmatpush1.msra.mxu0 %v226
      %250 = vmatprep.subr.mxu0 0.0
      %251 = vmatpush1.msra.mxu0 %v227
      %252 = vmatprep.subr.mxu0 0.0
      %253 = vmatpush1.msra.mxu0 %v228
      %254 = vmatprep.subr.mxu0 0.0
      %255 = vmatpush1.msra.mxu0 %v229
      %256 = vmatprep.subr.mxu0 0.0
      %257 = vmatpush1.msra.mxu0 %v230
      %258 = vmatprep.subr.mxu0 0.0
      %259 = vmatpush1.msra.mxu0 %v231
      %260 = vmatprep.subr.mxu0 0.0
      %261 = vmatpush1.msra.mxu0 0.0
      %262 = vmatprep.subr.mxu0 0.0
      %263 = vmatpush1.msra.mxu0 0.0
      %264 = vmatprep.subr.mxu0 0.0
      %265 = vmatpush1.msra.mxu0 0.0
      %266 = vmatprep.subr.mxu0 0.0
      %267 = vmatpush1.msra.mxu0 0.0
      %268 = vmatprep.subr.mxu0 0.0
      %269 = vmatpush1.msra.mxu0 0.0
      %270 = vmatprep.subr.mxu0 0.0
      %271 = vmatpush1.msra.mxu0 0.0
      %272 = vmatprep.subr.mxu0 0.0
      %273 = vmatpush1.msra.mxu0 0.0
      %274 = vmatprep.subr.mxu0 0.0
      %275 = vmatpush1.msra.mxu0 0.0
      %276 = vmatprep.subr.mxu0 0.0
      %277 = vmatpush1.msra.mxu0 0.0
      %278 = vmatprep.subr.mxu0 0.0
      %279 = vmatpush1.msra.mxu0 0.0
      %280 = vmatprep.subr.mxu0 0.0
      %281 = vmatpush1.msra.mxu0 0.0
      %282 = vmatprep.subr.mxu0 0.0
      %283 = vmatpush1.msra.mxu0 0.0
      %284 = vmatprep.subr.mxu0 0.0
      %285 = vmatpush1.msra.mxu0 0.0
      %286 = vmatprep.subr.mxu0 0.0
      %287 = vmatpush1.msra.mxu0 0.0
      %288 = vmatprep.subr.mxu0 0.0
      %289 = vmatpush1.msra.mxu0 0.0
      %290 = vmatprep.subr.mxu0 0.0
      %291 = vmatpush1.msra.mxu0 0.0
      %292 = vmatprep.subr.mxu0 0.0
      %293 = vmatpush1.msra.mxu0 0.0
      %294 = vmatprep.subr.mxu0 0.0
      %295 = vmatpush1.msra.mxu0 0.0
      %296 = vmatprep.subr.mxu0 0.0
      %297 = vmatpush1.msra.mxu0 0.0
      %298 = vmatprep.subr.mxu0 0.0
      %299 = vmatpush1.msra.mxu0 0.0
      %300 = vmatprep.mubr.f32.mxu0 0.0
      %301 = vmatmul.mubr.f32.gmra.mrb[0].mxu0 %v234
      %v302 = vpop.f32.mrb[0].mxu0
      %v303 = vadd.f32 0.0, %v302
      %v304 = vpop.f32.mrb[0].mxu0
      %305 = vdwg.mxu0
      %v306 = vld [vmem:[%s2] sm:$0x1]
      %v308 = vlaneseq
      %v309 = vshrl.u32 %v308, 7
      %v310 = vsub.s32 0, %v309
      %v311 = vrot.slane %v306, %v310
      %v313 = vmul.f32 %v303, %v311
      %v314 = vld [vmem:[%s3] sm:$0x1]
      %v316 = vlaneseq
      %v317 = vshrl.u32 %v316, 7
      %v318 = vsub.s32 0, %v317
      %v319 = vrot.slane %v314, %v318
      %v321 = vadd.f32 %v313, %v319
      %v322 = vmax.f32 %v321, 0.0
      %323 = vst.msk [vmem:[%s192] sm:$0xff] %vm216, %v322
      %p324 = scmp.lt.s32.totalorder %s15, 1
      %s325 = scalar_select %p324, %s15, 1
      %s326 = smul.addr %s325, 8
      %s327 = scalar_lea.vmem %s4, %s326
      // Predicated region
      $region37: #{encoder_forward.3} parent=35 // pred_check
        %p328 = pneg %p122
      $region38: #{encoder_forward.3} parent=35 // pred_check_branch
        %330 = sbr.rel (%p328) target = $region40
      $region39: #{encoder_forward.3} parent=35 // pred_region
        _
      $region40: #{encoder_forward.3} parent=35 // pred_fallthru
        _
    $region36: #{encoder_forward.3} parent=5 // pred_fallthru
      _
    %p331 = scmp.le.s32.totalorder 2, %s10
    // Predicated region
    $region41: #{encoder_forward.3} parent=5 // pred_check
      %p332 = pneg %p331
    $region42: #{encoder_forward.3} parent=5 // pred_check_branch
      %334 = sbr.rel (%p332) target = $region44
    $region43: #{encoder_forward.3} parent=5 // pred_region
      %s335 = ssub.s32 %s10, 2
      // Predicated region
      $region45: #{encoder_forward.3} parent=43 // pred_check
        %p336 = pneg %p128
      $region46: #{encoder_forward.3} parent=43 // pred_check_branch
        %338 = sbr.rel (%p336) target = $region48
      $region47: #{encoder_forward.3} parent=43 // pred_region
        %p339 = scmp.lt.s32.totalorder %s16, 1
        %s340 = scalar_select %p339, %s16, 1
        %s341 = smul.addr %s340, 8
        %s342 = scalar_lea.vmem %s4, %s341
      $region48: #{encoder_forward.3} parent=43 // pred_fallthru
        _
    $region44: #{encoder_forward.3} parent=5 // pred_fallthru
      _
  $region6: #{encoder_forward.3} parent=0 // loop_footer
    %s14 = sadd.s32 1, %s10
  $region7: #{encoder_forward.3} parent=0 // loop_footer_branch
    %9 = sbr.rel target = $region3
  $region8: #{encoder_forward.3} parent=0 // loop_exit
    _

// kernel: encoder_forward.5
$region0: #{encoder_forward.5}
  #allocation0 [shape = 'u32[]', space=smem, size = 0x4, offset = 0x4, fixed_abs, tag = 'smem constant byte address 0x4 - core index']
  #allocation1 [shape = 'u32[144,128]{1,0:T(1,128)}', space=vmem, size = 0x12000, scoped, tag = 'internal scratch']
  #allocation2 [shape = 'f32[16,64]{1,0:T(8,128)}', space=vmem, size = 0x2000, scoped, tag = 'scratch operand']
  #allocation3 [shape = 'f32[16,64]{1,0:T(8,128)}', space=vmem, size = 0x2000, scoped, tag = 'scratch operand']
  %s0 = inlined_call_operand.vmem [shape: f32[1,16,32], index: 0, kind: input, shape index: {}]
  %s1 = inlined_call_operand.vmem [shape: f32[32,64], index: 1, kind: input, shape index: {}]
  %s2 = inlined_call_operand.vmem [shape: f32[16,64], index: 2, kind: input, shape index: {}]
  %s3 = inlined_call_operand.vmem [shape: f32[1,64], index: 3, kind: input, shape index: {}]
  %s4 = inlined_call_operand.vmem [shape: f32[32,64], index: 4, kind: input, shape index: {}]
  %s5 = inlined_call_operand.vmem [shape: f32[16,64], index: 5, kind: input, shape index: {}]
  %s6 = inlined_call_operand.vmem [shape: f32[1,64], index: 6, kind: input, shape index: {}]
  %s7 = inlined_call_operand.vmem [shape: f32[1,16,32], index: 7, kind: output, shape index: {}]
  %s8 = sld [smem:[#allocation0]]
  $region45: #{encoder_forward.5} parent=0
    _
  %s10 = ssub.s32 1, %s8
  %s11 = scalar_select 0, %s10, %s8
  // Predicated region
  $region2: #{encoder_forward.5} parent=0 // pred_check
    _
  $region3: #{encoder_forward.5} parent=0 // pred_check_branch
    %13 = sbr.rel (0) target = $region5
  $region4: #{encoder_forward.5} parent=0 // pred_region
    _
  $region5: #{encoder_forward.5} parent=0 // pred_fallthru
    _
  // Predicated region
  $region6: #{encoder_forward.5} parent=0 // pred_check
    _
  $region7: #{encoder_forward.5} parent=0 // pred_check_branch
    %15 = sbr.rel (0) target = $region9
  $region8: #{encoder_forward.5} parent=0 // pred_region
    _
  $region9: #{encoder_forward.5} parent=0 // pred_fallthru
    _
  // Predicated region
  $region10: #{encoder_forward.5} parent=0 // pred_check
    _
  $region11: #{encoder_forward.5} parent=0 // pred_check_branch
    %17 = sbr.rel (0) target = $region13
  $region12: #{encoder_forward.5} parent=0 // pred_region
    _
  $region13: #{encoder_forward.5} parent=0 // pred_fallthru
    _
  // Predicated region
  $region14: #{encoder_forward.5} parent=0 // pred_check
    _
  $region15: #{encoder_forward.5} parent=0 // pred_check_branch
    %19 = sbr.rel (0) target = $region17
  $region16: #{encoder_forward.5} parent=0 // pred_region
    _
  $region17: #{encoder_forward.5} parent=0 // pred_fallthru
    _
  // Predicated region
  $region18: #{encoder_forward.5} parent=0 // pred_check
    _
  $region19: #{encoder_forward.5} parent=0 // pred_check_branch
    %21 = sbr.rel (0) target = $region21
  $region20: #{encoder_forward.5} parent=0 // pred_region
    _
  $region21: #{encoder_forward.5} parent=0 // pred_fallthru
    _
  // Predicated region
  $region22: #{encoder_forward.5} parent=0 // pred_check
    _
  $region23: #{encoder_forward.5} parent=0 // pred_check_branch
    %23 = sbr.rel (0) target = $region25
  $region24: #{encoder_forward.5} parent=0 // pred_region
    _
  $region25: #{encoder_forward.5} parent=0 // pred_fallthru
    _
  // Predicated region
  $region26: #{encoder_forward.5} parent=0 // pred_check
    _
  $region27: #{encoder_forward.5} parent=0 // pred_check_branch
    %25 = sbr.rel (0) target = $region29
  $region28: #{encoder_forward.5} parent=0 // pred_region
    _
  $region29: #{encoder_forward.5} parent=0 // pred_fallthru
    _
  %v26 = vld [vmem:[%s0] sm:$0xff]
  %v27 = vld [vmem:[%s0 + $0x8] sm:$0xff]
  %v28 = vld [vmem:[%s1] sm:$0xff]
  %v29 = vld [vmem:[%s1 + $0x8] sm:$0xff]
  %v30 = vld [vmem:[%s1 + $0x10] sm:$0xff]
  %v31 = vld [vmem:[%s1 + $0x18] sm:$0xff]
  %v32 = vld [vmem:[%s3] sm:$0x1]
  %v34 = vlaneseq
  %v35 = vshrl.u32 %v34, 7
  %v36 = vsub.s32 0, %v35
  %v37 = vrot.slane %v32, %v36
  %vm39 = vcmask 261120
  %v41 = vsel %vm39, %v26, 0
  %v44 = vsel %vm39, %v27, 0
  %46 = vmatprep.subr.mxu0 0.0
  %47 = vmatpush1.msra.mxu0 %v28
  %48 = vmatprep.subr.mxu0 0.0
  %49 = vmatpush1.msra.mxu0 %v29
  %50 = vmatprep.subr.mxu0 0.0
  %51 = vmatpush1.msra.mxu0 %v30
  %52 = vmatprep.subr.mxu0 0.0
  %53 = vmatpush1.msra.mxu0 %v31
  %54 = vmatprep.subr.mxu0 0.0
  %55 = vmatpush1.msra.mxu0 0.0
  %56 = vmatprep.subr.mxu0 0.0
  %57 = vmatpush1.msra.mxu0 0.0
  %58 = vmatprep.subr.mxu0 0.0
  %59 = vmatpush1.msra.mxu0 0.0
  %60 = vmatprep.subr.mxu0 0.0
  %61 = vmatpush1.msra.mxu0 0.0
  %62 = vmatprep.subr.mxu0 0.0
  %63 = vmatpush1.msra.mxu0 0.0
  %64 = vmatprep.subr.mxu0 0.0
  %65 = vmatpush1.msra.mxu0 0.0
  %66 = vmatprep.subr.mxu0 0.0
  %67 = vmatpush1.msra.mxu0 0.0
  %68 = vmatprep.subr.mxu0 0.0
  %69 = vmatpush1.msra.mxu0 0.0
  %70 = vmatprep.subr.mxu0 0.0
  %71 = vmatpush1.msra.mxu0 0.0
  %72 = vmatprep.subr.mxu0 0.0
  %73 = vmatpush1.msra.mxu0 0.0
  %74 = vmatprep.subr.mxu0 0.0
  %75 = vmatpush1.msra.mxu0 0.0
  %76 = vmatprep.subr.mxu0 0.0
  %77 = vmatpush1.msra.mxu0 0.0
  %78 = vmatprep.subr.mxu0 0.0
  %79 = vmatpush1.msra.mxu0 0.0
  %80 = vmatprep.subr.mxu0 0.0
  %81 = vmatpush1.msra.mxu0 0.0
  %82 = vmatprep.subr.mxu0 0.0
  %83 = vmatpush1.msra.mxu0 0.0
  %84 = vmatprep.subr.mxu0 0.0
  %85 = vmatpush1.msra.mxu0 0.0
  %86 = vmatprep.subr.mxu0 0.0
  %87 = vmatpush1.msra.mxu0 0.0
  %88 = vmatprep.subr.mxu0 0.0
  %89 = vmatpush1.msra.mxu0 0.0
  %90 = vmatprep.subr.mxu0 0.0
  %91 = vmatpush1.msra.mxu0 0.0
  %92 = vmatprep.subr.mxu0 0.0
  %93 = vmatpush1.msra.mxu0 0.0
  %94 = vmatprep.subr.mxu0 0.0
  %95 = vmatpush1.msra.mxu0 0.0
  %96 = vmatprep.subr.mxu0 0.0
  %97 = vmatpush1.msra.mxu0 0.0
  %98 = vmatprep.subr.mxu0 0.0
  %99 = vmatpush1.msra.mxu0 0.0
  %100 = vmatprep.subr.mxu0 0.0
  %101 = vmatpush1.msra.mxu0 0.0
  %102 = vmatprep.subr.mxu0 0.0
  %103 = vmatpush1.msra.mxu0 0.0
  %104 = vmatprep.subr.mxu0 0.0
  %105 = vmatpush1.msra.mxu0 0.0
  %106 = vmatprep.subr.mxu0 0.0
  %107 = vmatpush1.msra.mxu0 0.0
  %108 = vmatprep.subr.mxu0 0.0
  %109 = vmatpush1.msra.mxu0 0.0
  %110 = vmatprep.mubr.f32.mxu0 0.0
  %111 = vmatmul.mubr.f32.gmra.mrb[0].mxu0 %v41
  %v112 = vpop.f32.mrb[0].mxu0
  %v113 = vadd.f32 %v37, %v112
  %v114 = vpop.f32.mrb[0].mxu0
  %115 = vmatprep.mubr.f32.mxu0 0.0
  %116 = vmatmul.mubr.f32.gmra.mrb[0].mxu0 %v44
  %v117 = vpop.f32.mrb[0].mxu0
  %v118 = vadd.f32 %v37, %v117
  %v119 = vpop.f32.mrb[0].mxu0
  %120 = vdwg.mxu0
  %vm121 = vcmask 523264
  %122 = vst.msk [vmem:[#allocation2] sm:$0xff] %vm121, %v113
  %123 = vst.msk [vmem:[#allocation2 + $0x8] sm:$0xff] %vm121, %v118
  %v124 = vld [vmem:[%s4] sm:$0xff]
  %v125 = vld [vmem:[%s4 + $0x8] sm:$0xff]
  %v126 = vld [vmem:[%s4 + $0x10] sm:$0xff]
  %v127 = vld [vmem:[%s4 + $0x18] sm:$0xff]
  %v128 = vld [vmem:[%s6] sm:$0x1]
  %v130 = vlaneseq
  %v131 = vshrl.u32 %v130, 7
  %v132 = vsub.s32 0, %v131
  %v133 = vrot.slane %v128, %v132
  %135 = vmatprep.subr.mxu0 0.0
  %136 = vmatpush1.msra.mxu0 %v124
  %137 = vmatprep.subr.mxu0 0.0
  %138 = vmatpush1.msra.mxu0 %v125
  %139 = vmatprep.subr.mxu0 0.0
  %140 = vmatpush1.msra.mxu0 %v126
  %141 = vmatprep.subr.mxu0 0.0
  %142 = vmatpush1.msra.mxu0 %v127
  %143 = vmatprep.subr.mxu0 0.0
  %144 = vmatpush1.msra.mxu0 0.0
  %145 = vmatprep.subr.mxu0 0.0
  %146 = vmatpush1.msra.mxu0 0.0
  %147 = vmatprep.subr.mxu0 0.0
  %148 = vmatpush1.msra.mxu0 0.0
  %149 = vmatprep.subr.mxu0 0.0
  %150 = vmatpush1.msra.mxu0 0.0
  %151 = vmatprep.subr.mxu0 0.0
  %152 = vmatpush1.msra.mxu0 0.0
  %153 = vmatprep.subr.mxu0 0.0
  %154 = vmatpush1.msra.mxu0 0.0
  %155 = vmatprep.subr.mxu0 0.0
  %156 = vmatpush1.msra.mxu0 0.0
  %157 = vmatprep.subr.mxu0 0.0
  %158 = vmatpush1.msra.mxu0 0.0
  %159 = vmatprep.subr.mxu0 0.0
  %160 = vmatpush1.msra.mxu0 0.0
  %161 = vmatprep.subr.mxu0 0.0
  %162 = vmatpush1.msra.mxu0 0.0
  %163 = vmatprep.subr.mxu0 0.0
  %164 = vmatpush1.msra.mxu0 0.0
  %165 = vmatprep.subr.mxu0 0.0
  %166 = vmatpush1.msra.mxu0 0.0
  %167 = vmatprep.subr.mxu0 0.0
  %168 = vmatpush1.msra.mxu0 0.0
  %169 = vmatprep.subr.mxu0 0.0
  %170 = vmatpush1.msra.mxu0 0.0
  %171 = vmatprep.subr.mxu0 0.0
  %172 = vmatpush1.msra.mxu0 0.0
  %173 = vmatprep.subr.mxu0 0.0
  %174 = vmatpush1.msra.mxu0 0.0
  %175 = vmatprep.subr.mxu0 0.0
  %176 = vmatpush1.msra.mxu0 0.0
  %177 = vmatprep.subr.mxu0 0.0
  %178 = vmatpush1.msra.mxu0 0.0
  %179 = vmatprep.subr.mxu0 0.0
  %180 = vmatpush1.msra.mxu0 0.0
  %181 = vmatprep.subr.mxu0 0.0
  %182 = vmatpush1.msra.mxu0 0.0
  %183 = vmatprep.subr.mxu0 0.0
  %184 = vmatpush1.msra.mxu0 0.0
  %185 = vmatprep.subr.mxu0 0.0
  %186 = vmatpush1.msra.mxu0 0.0
  %187 = vmatprep.subr.mxu0 0.0
  %188 = vmatpush1.msra.mxu0 0.0
  %189 = vmatprep.subr.mxu0 0.0
  %190 = vmatpush1.msra.mxu0 0.0
  %191 = vmatprep.subr.mxu0 0.0
  %192 = vmatpush1.msra.mxu0 0.0
  %193 = vmatprep.subr.mxu0 0.0
  %194 = vmatpush1.msra.mxu0 0.0
  %195 = vmatprep.subr.mxu0 0.0
  %196 = vmatpush1.msra.mxu0 0.0
  %197 = vmatprep.subr.mxu0 0.0
  %198 = vmatpush1.msra.mxu0 0.0
  %199 = vmatprep.mubr.f32.mxu0 0.0
  %200 = vmatmul.mubr.f32.gmra.mrb[0].mxu0 %v41
  %v201 = vpop.f32.mrb[0].mxu0
  %v202 = vadd.f32 %v133, %v201
  %v203 = vpop.f32.mrb[0].mxu0
  %204 = vmatprep.mubr.f32.mxu0 0.0
  %205 = vmatmul.mubr.f32.gmra.mrb[0].mxu0 %v44
  %v206 = vpop.f32.mrb[0].mxu0
  %v207 = vadd.f32 %v133, %v206
  %v208 = vpop.f32.mrb[0].mxu0
  %209 = vdwg.mxu0
  %210 = vst.msk [vmem:[#allocation3] sm:$0xff] %vm121, %v202
  %211 = vst.msk [vmem:[#allocation3 + $0x8] sm:$0xff] %vm121, %v207
  loop: start=0, step=1, limit=8
  $region30: #{encoder_forward.5} parent=0 // loop_pre_header
    _
  $region31: #{encoder_forward.5} parent=0 // loop_header
    %s213 = sphi 0, %s217
    %p214 = scmp.ge.s32.totalorder %s213, 8
    %v218 = vphi 0.0, %v329
    %v219 = vphi 0.0, %v323
    %v220 = vphi 0.0, %v433
    %v221 = vphi 0.0, %v427
  $region32: #{encoder_forward.5} parent=0 // loop_header_branch
    %216 = sbr.rel (%p214) target = $region36
  $region33: #{encoder_forward.5} parent=0 // loop_body
    %s222 = ssub.s32 7, %s213
    %s223 = smul.u32 %s213, 2
    %s224 = smul.u32 %s222, 2
    %s225 = scalar_lea.vmem [#allocation2], %s223
    %v226 = vld [vmem:[%s225] sm:$0x3]
    %v227 = vld [vmem:[%s2] sm:$0xff]
    %v228 = vld [vmem:[%s2 + $0x8] sm:$0xff]
    %230 = vrot.lane.b32.xlu0 %v218, 80
    %v231 = vpop.permute.xlu0 %230
    %vm232 = vcmask 130048
    %v233 = vsel %vm232, %v231, 0
    %235 = vmatprep.subr.mxu0 0.0
    %236 = vmatpush1.msra.mxu0 %v227
    %237 = vmatprep.subr.mxu0 0.0
    %238 = vmatpush1.msra.mxu0 %v228
    %239 = vmatprep.subr.mxu0 0.0
    %240 = vmatpush1.msra.mxu0 0.0
    %241 = vmatprep.subr.mxu0 0.0
    %242 = vmatpush1.msra.mxu0 0.0
    %243 = vmatprep.subr.mxu0 0.0
    %244 = vmatpush1.msra.mxu0 0.0
    %245 = vmatprep.subr.mxu0 0.0
    %246 = vmatpush1.msra.mxu0 0.0
    %247 = vmatprep.subr.mxu0 0.0
    %248 = vmatpush1.msra.mxu0 0.0
    %249 = vmatprep.subr.mxu0 0.0
    %250 = vmatpush1.msra.mxu0 0.0
    %251 = vmatprep.subr.mxu0 0.0
    %252 = vmatpush1.msra.mxu0 0.0
    %253 = vmatprep.subr.mxu0 0.0
    %254 = vmatpush1.msra.mxu0 0.0
    %255 = vmatprep.subr.mxu0 0.0
    %256 = vmatpush1.msra.mxu0 0.0
    %257 = vmatprep.subr.mxu0 0.0
    %258 = vmatpush1.msra.mxu0 0.0
    %259 = vmatprep.subr.mxu0 0.0
    %260 = vmatpush1.msra.mxu0 0.0
    %261 = vmatprep.subr.mxu0 0.0
    %262 = vmatpush1.msra.mxu0 0.0
    %263 = vmatprep.subr.mxu0 0.0
    %264 = vmatpush1.msra.mxu0 0.0
    %265 = vmatprep.subr.mxu0 0.0
    %266 = vmatpush1.msra.mxu0 0.0
    %267 = vmatprep.subr.mxu0 0.0
    %268 = vmatpush1.msra.mxu0 0.0
    %269 = vmatprep.subr.mxu0 0.0
    %270 = vmatpush1.msra.mxu0 0.0
    %271 = vmatprep.subr.mxu0 0.0
    %272 = vmatpush1.msra.mxu0 0.0
    %273 = vmatprep.subr.mxu0 0.0
    %274 = vmatpush1.msra.mxu0 0.0
    %275 = vmatprep.subr.mxu0 0.0
    %276 = vmatpush1.msra.mxu0 0.0
    %277 = vmatprep.subr.mxu0 0.0
    %278 = vmatpush1.msra.mxu0 0.0
    %279 = vmatprep.subr.mxu0 0.0
    %280 = vmatpush1.msra.mxu0 0.0
    %281 = vmatprep.subr.mxu0 0.0
    %282 = vmatpush1.msra.mxu0 0.0
    %283 = vmatprep.subr.mxu0 0.0
    %284 = vmatpush1.msra.mxu0 0.0
    %285 = vmatprep.subr.mxu0 0.0
    %286 = vmatpush1.msra.mxu0 0.0
    %287 = vmatprep.subr.mxu0 0.0
    %288 = vmatpush1.msra.mxu0 0.0
    %289 = vmatprep.subr.mxu0 0.0
    %290 = vmatpush1.msra.mxu0 0.0
    %291 = vmatprep.subr.mxu0 0.0
    %292 = vmatpush1.msra.mxu0 0.0
    %293 = vmatprep.subr.mxu0 0.0
    %294 = vmatpush1.msra.mxu0 0.0
    %295 = vmatprep.subr.mxu0 0.0
    %296 = vmatpush1.msra.mxu0 0.0
    %297 = vmatprep.subr.mxu0 0.0
    %298 = vmatpush1.msra.mxu0 0.0
    %299 = vmatprep.mubr.f32.mxu0 0.0
    %300 = vmatmul.mubr.f32.gmra.mrb[0].mxu0 %v233
    %v301 = vpop.f32.mrb[0].mxu0
    %v302 = vadd.f32 0.0, %v301
    %v303 = vpop.f32.mrb[0].mxu0
    %304 = vdwg.mxu0
    %v305 = vadd.f32 %v226, %v302
    %v306 = vxor.u32 %v305, 2147483648
    %v307 = vmul.f32 %v306, 1.442695
    %v308 = vpow.pop %v307
    %v309 = vadd.f32 %v308, 1.0
    %v310 = vrcp.pop %v309
    %v311 = vmul.f32 1.0, %v310
    %v312 = vtanh.pop %v305
    %v313 = vmul.f32 %v311, %v219
    %315 = vrot.lane.b32.xlu0 %v312, 96
    %v316 = vpop.permute.xlu0 %315
    %v318 = vmul.f32 %v311, %v316
    %320 = vrot.lane.b32.xlu0 %v318, 16
    %v321 = vpop.permute.xlu0 %320
    %v323 = vadd.f32 %v313, %v321
    %v324 = vtanh.pop %v323
    %326 = vrot.lane.b32.xlu0 %v324, 32
    %v327 = vpop.permute.xlu0 %326
    %v329 = vmul.f32 %v311, %v327
    %s330 = scalar_lea.vmem [#allocation3], %s224
    %v331 = vld [vmem:[%s330] sm:$0x3]
    %v332 = vld [vmem:[%s5] sm:$0xff]
    %v333 = vld [vmem:[%s5 + $0x8] sm:$0xff]
    %335 = vrot.lane.b32.xlu0 %v220, 80
    %v336 = vpop.permute.xlu0 %335
    %v337 = vsel %vm232, %v336, 0
    %339 = vmatprep.subr.mxu0 0.0
    %340 = vmatpush1.msra.mxu0 %v332
    %341 = vmatprep.subr.mxu0 0.0
    %342 = vmatpush1.msra.mxu0 %v333
    %343 = vmatprep.subr.mxu0 0.0
    %344 = vmatpush1.msra.mxu0 0.0
    %345 = vmatprep.subr.mxu0 0.0
    %346 = vmatpush1.msra.mxu0 0.0
    %347 = vmatprep.subr.mxu0 0.0
    %348 = vmatpush1.msra.mxu0 0.0
    %349 = vmatprep.subr.mxu0 0.0
    %350 = vmatpush1.msra.mxu0 0.0
    %351 = vmatprep.subr.mxu0 0.0
    %352 = vmatpush1.msra.mxu0 0.0
    %353 = vmatprep.subr.mxu0 0.0
    %354 = vmatpush1.msra.mxu0 0.0
    %355 = vmatprep.subr.mxu0 0.0
    %356 = vmatpush1.msra.mxu0 0.0
    %357 = vmatprep.subr.mxu0 0.0
    %358 = vmatpush1.msra.mxu0 0.0
    %359 = vmatprep.subr.mxu0 0.0
    %360 = vmatpush1.msra.mxu0 0.0
    %361 = vmatprep.subr.mxu0 0.0
    %362 = vmatpush1.msra.mxu0 0.0
    %363 = vmatprep.subr.mxu0 0.0
    %364 = vmatpush1.msra.mxu0 0.0
    %365 = vmatprep.subr.mxu0 0.0
    %366 = vmatpush1.msra.mxu0 0.0
    %367 = vmatprep.subr.mxu0 0.0
    %368 = vmatpush1.msra.mxu0 0.0
    %369 = vmatprep.subr.mxu0 0.0
    %370 = vmatpush1.msra.mxu0 0.0
    %371 = vmatprep.subr.mxu0 0.0
    %372 = vmatpush1.msra.mxu0 0.0
    %373 = vmatprep.subr.mxu0 0.0
    %374 = vmatpush1.msra.mxu0 0.0
    %375 = vmatprep.subr.mxu0 0.0
    %376 = vmatpush1.msra.mxu0 0.0
    %377 = vmatprep.subr.mxu0 0.0
    %378 = vmatpush1.msra.mxu0 0.0
    %379 = vmatprep.subr.mxu0 0.0
    %380 = vmatpush1.msra.mxu0 0.0
    %381 = vmatprep.subr.mxu0 0.0
    %382 = vmatpush1.msra.mxu0 0.0
    %383 = vmatprep.subr.mxu0 0.0
    %384 = vmatpush1.msra.mxu0 0.0
    %385 = vmatprep.subr.mxu0 0.0
    %386 = vmatpush1.msra.mxu0 0.0
    %387 = vmatprep.subr.mxu0 0.0
    %388 = vmatpush1.msra.mxu0 0.0
    %389 = vmatprep.subr.mxu0 0.0
    %390 = vmatpush1.msra.mxu0 0.0
    %391 = vmatprep.subr.mxu0 0.0
    %392 = vmatpush1.msra.mxu0 0.0
    %393 = vmatprep.subr.mxu0 0.0
    %394 = vmatpush1.msra.mxu0 0.0
    %395 = vmatprep.subr.mxu0 0.0
    %396 = vmatpush1.msra.mxu0 0.0
    %397 = vmatprep.subr.mxu0 0.0
    %398 = vmatpush1.msra.mxu0 0.0
    %399 = vmatprep.subr.mxu0 0.0
    %400 = vmatpush1.msra.mxu0 0.0
    %401 = vmatprep.subr.mxu0 0.0
    %402 = vmatpush1.msra.mxu0 0.0
    %403 = vmatprep.mubr.f32.mxu0 0.0
    %404 = vmatmul.mubr.f32.gmra.mrb[0].mxu0 %v337
    %v405 = vpop.f32.mrb[0].mxu0
    %v406 = vadd.f32 0.0, %v405
    %v407 = vpop.f32.mrb[0].mxu0
    %408 = vdwg.mxu0
    %v409 = vadd.f32 %v331, %v406
    %v410 = vxor.u32 %v409, 2147483648
    %v411 = vmul.f32 %v410, 1.442695
    %v412 = vpow.pop %v411
    %v413 = vadd.f32 %v412, 1.0
    %v414 = vrcp.pop %v413
    %v415 = vmul.f32 1.0, %v414
    %v416 = vtanh.pop %v409
    %v417 = vmul.f32 %v415, %v221
    %419 = vrot.lane.b32.xlu0 %v416, 96
    %v420 = vpop.permute.xlu0 %419
    %v422 = vmul.f32 %v415, %v420
    %424 = vrot.lane.b32.xlu0 %v422, 16
    %v425 = vpop.permute.xlu0 %424
    %v427 = vadd.f32 %v417, %v425
    %v428 = vtanh.pop %v427
    %430 = vrot.lane.b32.xlu0 %v428, 32
    %v431 = vpop.permute.xlu0 %430
    %v433 = vmul.f32 %v415, %v431
    %435 = vrot.lane.b32.xlu0 %v329, 80
    %v436 = vpop.permute.xlu0 %435
    %s438 = scalar_lea.vmem %s7, %s223
    %vm439 = vcmask 123904
    %440 = vst.msk [vmem:[%s438] sm:$0x3] %vm439, %v436
    %442 = vrot.lane.b32.xlu0 %v433, 96
    %v443 = vpop.permute.xlu0 %442
    %s445 = scalar_lea.vmem %s7, %s224
    %vm446 = vcmask 255104
    %447 = vst.msk [vmem:[%s445] sm:$0x3] %vm446, %v443
  $region34: #{encoder_forward.5} parent=0 // loop_footer
    %s217 = sadd.s32 1, %s213
  $region35: #{encoder_forward.5} parent=0 // loop_footer_branch
    %212 = sbr.rel target = $region31
  $region36: #{encoder_forward.5} parent=0 // loop_exit
    _
  // Predicated region
  $region37: #{encoder_forward.5} parent=0 // pred_check
    _
  $region38: #{encoder_forward.5} parent=0 // pred_check_branch
    %449 = sbr.rel (0) target = $region40
  $region39: #{encoder_forward.5} parent=0 // pred_region
    _
  $region40: #{encoder_forward.5} parent=0 // pred_fallthru
    _
  // Predicated region
  $region41: #{encoder_forward.5} parent=0 // pred_check
    _
  $region42: #{encoder_forward.5} parent=0 // pred_check_branch
    %451 = sbr.rel (0) target = $region44
  $region43: #{encoder_forward.5} parent=0 // pred_region
    _
  $region44: #{encoder_forward.5} parent=0 // pred_fallthru
    _

</llo_original>
